<compile_context>
chip_gen: v6e
topology: v6e:2x2x1
jax: 0.10.0
libtpu: 0.0.40
codegen_flags: <defaults>
</compile_context>

<pallas_src>
import math

import jax
import jax.numpy as jnp
from jax import lax
from jax.experimental import pallas as pl
from jax.experimental.pallas import tpu as pltpu

_SQRT2 = math.sqrt(2.0)
_LN_EPS = 1e-12


def _round_up(a, b):
    return (a + b - 1) // b * b


def _image_ordering_kernel(x_ref, y_ref, wlin_ref, blin_ref, gamma_ref, beta_ref,
                           wbil_ref, bbil_ref, out_ref):
    compute_dtype = wlin_ref.dtype

    def project(v_ref):
        # Rows arrive in their original (f32) dtype; cast in VMEM right before
        # the MXU dot so the wrapper never writes a bf16 copy back to HBM.
        v = v_ref[...].astype(compute_dtype)
        h = jnp.dot(v, wlin_ref[...], preferred_element_type=jnp.float32)
        h = h + blin_ref[...]                                   # (1, H) broadcast
        # Exact (erf-based) GELU in f32 (matches UNITER's GELU; v5e has no
        # bf16 VPU).  TODO(synk): if VALU-bound on v6e/v7x, run this (and the
        # gamma/beta affine) in bf16 or switch to tanh-approx GELU (EUP slot).
        h = 0.5 * h * (1.0 + lax.erf(h * (1.0 / _SQRT2)))
        # Single-pass LayerNorm stats (biased variance, eps inside rsqrt).
        mu = jnp.mean(h, axis=-1, keepdims=True)
        m2 = jnp.mean(h * h, axis=-1, keepdims=True)
        var = m2 - mu * mu
        hn = (h - mu) * lax.rsqrt(var + _LN_EPS)
        return hn * gamma_ref[...] + beta_ref[...]

    hx = project(x_ref)
    hy = project(y_ref)

    # Bilinear head (out_features == 1):
    #   score_n = sum_j (hx @ W_bil)_{n,j} * hy_{n,j} + b_bil
    # NOTE: on the fast path hx is cast to bf16 for the MXU while hy stays f32
    # in the elementwise product, so scores are not bit-symmetric under (x, y)
    # swap; the f32 parity path (compute_dtype=jnp.float32) is symmetric.
    t = jnp.dot(hx.astype(compute_dtype), wbil_ref[...],
                preferred_element_type=jnp.float32)
    score = jnp.sum(t * hy, axis=-1, keepdims=True) + bbil_ref[0]   # (tile_m, 1)
    out_ref[...] = score.astype(out_ref.dtype)


def prepare_image_ordering_params(params, compute_dtype=jnp.bfloat16):
    """One-time parameter prep (transpose + casts), kept off the per-call path.

    params: w_lin (H,H out,in), b_lin (H,), gamma (H,), beta (H,),
            w_bil (1,H,H), b_bil (1,)
    """
    H = params["w_lin"].shape[0]
    return {
        "wlin_t": jnp.asarray(params["w_lin"], jnp.float32).T.astype(compute_dtype),
        "blin": jnp.asarray(params["b_lin"], jnp.float32).reshape(1, H),
        "gamma": jnp.asarray(params["gamma"], jnp.float32).reshape(1, H),
        "beta": jnp.asarray(params["beta"], jnp.float32).reshape(1, H),
        "wbil": jnp.asarray(params["w_bil"], jnp.float32)[0].astype(compute_dtype),
        "bbil": jnp.asarray(params["b_bil"], jnp.float32).reshape(1),
    }


def image_ordering(x, y, prepared, *, tile_m=256, vmem_limit_bytes=32 * 1024 * 1024):
    """Returns (N, 1) float32 scores.

    tile_m: rows per grid step (multiple of 8).  256 is safe across
    v5e/v6e/v7x; on v6e, tile_m=512 with vmem_limit_bytes ~48 MB halves the
    per-step pipeline overhead.  Ragged N uses a pl.cdiv grid (no padding
    pass); the boundary tile's out-of-range rows are masked on store.
    """
    N, H = x.shape
    assert y.shape == (N, H)

    tile_m = max(8, min(_round_up(tile_m, 8), _round_up(N, 8)))
    grid_m = pl.cdiv(N, tile_m)

    row_spec = pl.BlockSpec((tile_m, H), lambda i: (i, 0))
    # Weights / LN vectors use a constant index_map -> resident across the grid.
    # TODO(synk): on v7x (64 MiB VMEM) single-buffer these never-changing blocks
    # via pipeline_mode=pl.Buffered(1) to free VMEM for larger row tiles.
    full_hh = pl.BlockSpec((H, H), lambda i: (0, 0))
    full_1h = pl.BlockSpec((1, H), lambda i: (0, 0))
    smem_scalar = pl.BlockSpec(memory_space=pltpu.MemorySpace.SMEM)

    w_bytes = prepared["wlin_t"].dtype.itemsize
    cost = pl.CostEstimate(
        flops=6 * N * H * H,                              # 2 proj + 1 bilinear matmul
        transcendentals=2 * N * H,                        # erf per GELU element
        bytes_accessed=(2 * N * H * x.dtype.itemsize      # x, y reads
                        + N * 4                           # score writes
                        + 2 * H * H * w_bytes             # W_lin^T, W_bil
                        + 3 * H * 4 + 4),                 # b_lin, gamma, beta, b_bil
    )

    return pl.pallas_call(
        _image_ordering_kernel,
        out_shape=jax.ShapeDtypeStruct((N, 1), jnp.float32),
        grid_spec=pltpu.PrefetchScalarGridSpec(
            num_scalar_prefetch=0,
            grid=(grid_m,),
            in_specs=[row_spec, row_spec, full_hh, full_1h, full_1h, full_1h,
                      full_hh, smem_scalar],
            out_specs=pl.BlockSpec((tile_m, 1), lambda i: (i, 0)),
        ),
        compiler_params=pltpu.CompilerParams(
            dimension_semantics=("parallel",),
            vmem_limit_bytes=vmem_limit_bytes),
        cost_estimate=cost,
    )(x, y, prepared["wlin_t"], prepared["blin"], prepared["gamma"],
      prepared["beta"], prepared["wbil"], prepared["bbil"])


def _reference(x, y, params):
    def project(v):
        h = v @ params["w_lin"].T + params["b_lin"]
        h = 0.5 * h * (1.0 + lax.erf(h / _SQRT2))
        mu = jnp.mean(h, axis=-1, keepdims=True)
        var = jnp.mean((h - mu) ** 2, axis=-1, keepdims=True)
        hn = (h - mu) / jnp.sqrt(var + _LN_EPS)
        return hn * params["gamma"] + params["beta"]

    hx, hy = project(x), project(y)
    score = jnp.einsum("ni,oij,nj->no", hx, params["w_bil"], hy) + params["b_bil"]
    return score


if __name__ == "__main__":
    key = jax.random.PRNGKey(0)
    N, H = 8, 32

    ks = jax.random.split(key, 8)
    params = {
        "w_lin": 0.05 * jax.random.normal(ks[0], (H, H), jnp.float32),
        "b_lin": 0.05 * jax.random.normal(ks[1], (H,), jnp.float32),
        "gamma": 1.0 + 0.05 * jax.random.normal(ks[2], (H,), jnp.float32),
        "beta": 0.05 * jax.random.normal(ks[3], (H,), jnp.float32),
        "w_bil": 0.05 * jax.random.normal(ks[4], (1, H, H), jnp.float32),
        "b_bil": 0.05 * jax.random.normal(ks[5], (1,), jnp.float32),
    }
    x = jax.random.normal(ks[6], (N, H), jnp.float32)
    y = jax.random.normal(ks[7], (N, H), jnp.float32)

    ref = _reference(x, y, params)

    # Strict-parity path: f32 matmuls.
    prep_f32 = prepare_image_ordering_params(params, compute_dtype=jnp.float32)
    out_f32 = jax.block_until_ready(image_ordering(x, y, prep_f32))
    assert out_f32.shape == (N, 1)
    assert jnp.allclose(out_f32, ref, atol=1e-4, rtol=1e-4), (out_f32, ref)

    # Fast path: bf16 matmul operands, f32 accumulation + f32 GELU/LayerNorm.
    prep_bf16 = prepare_image_ordering_params(params, compute_dtype=jnp.bfloat16)
    out_bf16 = jax.block_until_ready(image_ordering(x, y, prep_bf16))
    assert out_bf16.shape == (N, 1)
    assert jnp.allclose(out_bf16, ref, atol=1e-1, rtol=1e-1), (out_bf16, ref)

    # Ragged batch (N not a multiple of tile_m) -> multi-step grid with a
    # partial boundary tile; exercises the pl.cdiv path (no jnp.pad anywhere).
    N2 = 20
    x2 = jax.random.normal(jax.random.PRNGKey(1), (N2, H), jnp.float32)
    y2 = jax.random.normal(jax.random.PRNGKey(2), (N2, H), jnp.float32)
    out2 = jax.block_until_ready(image_ordering(x2, y2, prep_f32, tile_m=8))
    ref2 = _reference(x2, y2, params)
    assert out2.shape == (N2, 1)
    assert jnp.allclose(out2, ref2, atol=1e-4, rtol=1e-4), (out2, ref2)

    print("KERNEL_OK")
</pallas_src>

<mosaic_0001>
module attributes {stable_mosaic.version = 11 : i64} {
  func.func @_image_ordering_kernel(%arg0: i32, %arg1: memref<8x32xf32, #tpu.memory_space<vmem>>, %arg2: memref<8x32xf32, #tpu.memory_space<vmem>>, %arg3: memref<32x32xf32, #tpu.memory_space<vmem>>, %arg4: memref<1x32xf32, #tpu.memory_space<vmem>>, %arg5: memref<1x32xf32, #tpu.memory_space<vmem>>, %arg6: memref<1x32xf32, #tpu.memory_space<vmem>>, %arg7: memref<32x32xf32, #tpu.memory_space<vmem>>, %arg8: memref<1xf32, #tpu.memory_space<smem>>, %arg9: memref<8x1xf32, #tpu.memory_space<vmem>>) attributes {dimension_semantics = [#tpu.dimension_semantics<parallel>], iteration_bounds = array<i64: 1>, scalar_prefetch = 0 : i64, scratch_operands = 0 : i64, tpu.core_type = #tpu.core_type<tc>, window_params = [{transform_indices = @transform_0, window_bounds = array<i64: 8, 32>}, {transform_indices = @transform_1, window_bounds = array<i64: 8, 32>}, {pipeline_mode = #tpu.pipeline_mode<synchronous>, transform_indices = @transform_2, window_bounds = array<i64: 32, 32>}, {pipeline_mode = #tpu.pipeline_mode<synchronous>, transform_indices = @transform_3, window_bounds = array<i64: 1, 32>}, {pipeline_mode = #tpu.pipeline_mode<synchronous>, transform_indices = @transform_4, window_bounds = array<i64: 1, 32>}, {pipeline_mode = #tpu.pipeline_mode<synchronous>, transform_indices = @transform_5, window_bounds = array<i64: 1, 32>}, {pipeline_mode = #tpu.pipeline_mode<synchronous>, transform_indices = @transform_6, window_bounds = array<i64: 32, 32>}, {transform_indices = @transform_7, window_bounds = array<i64: 1>}, {transform_indices = @transform_8, window_bounds = array<i64: 8, 1>}]} {
    %c0 = arith.constant 0 : index
    %c0_0 = arith.constant 0 : index
    %0 = vector.load %arg1[%c0, %c0_0] : memref<8x32xf32, #tpu.memory_space<vmem>>, vector<8x32xf32>
    %c0_1 = arith.constant 0 : index
    %c0_2 = arith.constant 0 : index
    %1 = vector.load %arg3[%c0_1, %c0_2] : memref<32x32xf32, #tpu.memory_space<vmem>>, vector<32x32xf32>
    %cst = arith.constant dense<0.000000e+00> : vector<8x32xf32>
    %2 = tpu.matmul %0, %1, %cst {dimension_numbers = #tpu.dot_dimension_numbers<[1], [0], [0], [1], [0, 0, 1, 1], [], []>} : vector<8x32xf32>, vector<32x32xf32>, vector<8x32xf32> -> vector<8x32xf32>
    %c0_3 = arith.constant 0 : index
    %c0_4 = arith.constant 0 : index
    %3 = vector.load %arg4[%c0_3, %c0_4] : memref<1x32xf32, #tpu.memory_space<vmem>>, vector<1x32xf32>
    %4 = vector.broadcast %3 : vector<1x32xf32> to vector<8x32xf32>
    %5 = arith.addf %2, %4 : vector<8x32xf32>
    %cst_5 = arith.constant 5.000000e-01 : f32
    %6 = vector.broadcast %cst_5 : f32 to vector<8x32xf32>
    %7 = arith.mulf %6, %5 : vector<8x32xf32>
    %cst_6 = arith.constant 0.707106769 : f32
    %8 = vector.broadcast %cst_6 : f32 to vector<8x32xf32>
    %9 = arith.mulf %5, %8 : vector<8x32xf32>
    %10 = math.erf %9 : vector<8x32xf32>
    %cst_7 = arith.constant 1.000000e+00 : f32
    %11 = vector.broadcast %cst_7 : f32 to vector<8x32xf32>
    %12 = arith.addf %11, %10 : vector<8x32xf32>
    %13 = arith.mulf %7, %12 : vector<8x32xf32>
    %cst_8 = arith.constant dense<0.000000e+00> : vector<8xf32>
    %14 = vector.multi_reduction <add>, %13, %cst_8 [1] : vector<8x32xf32> to vector<8xf32>
    %15 = vector.shape_cast %14 : vector<8xf32> to vector<8x1xf32>
    %cst_9 = arith.constant 3.200000e+01 : f32
    %16 = vector.broadcast %cst_9 : f32 to vector<8x1xf32>
    %17 = arith.divf %15, %16 : vector<8x1xf32>
    %18 = arith.mulf %13, %13 : vector<8x32xf32>
    %cst_10 = arith.constant dense<0.000000e+00> : vector<8xf32>
    %19 = vector.multi_reduction <add>, %18, %cst_10 [1] : vector<8x32xf32> to vector<8xf32>
    %20 = vector.shape_cast %19 : vector<8xf32> to vector<8x1xf32>
    %cst_11 = arith.constant 3.200000e+01 : f32
    %21 = vector.broadcast %cst_11 : f32 to vector<8x1xf32>
    %22 = arith.divf %20, %21 : vector<8x1xf32>
    %23 = arith.mulf %17, %17 : vector<8x1xf32>
    %24 = arith.subf %22, %23 : vector<8x1xf32>
    %25 = vector.broadcast %17 : vector<8x1xf32> to vector<8x32xf32>
    %26 = arith.subf %13, %25 : vector<8x32xf32>
    %cst_12 = arith.constant 9.99999996E-13 : f32
    %27 = vector.broadcast %cst_12 : f32 to vector<8x1xf32>
    %28 = arith.addf %24, %27 : vector<8x1xf32>
    %29 = math.rsqrt %28 : vector<8x1xf32>
    %30 = vector.broadcast %29 : vector<8x1xf32> to vector<8x32xf32>
    %31 = arith.mulf %26, %30 : vector<8x32xf32>
    %c0_13 = arith.constant 0 : index
    %c0_14 = arith.constant 0 : index
    %32 = vector.load %arg5[%c0_13, %c0_14] : memref<1x32xf32, #tpu.memory_space<vmem>>, vector<1x32xf32>
    %33 = vector.broadcast %32 : vector<1x32xf32> to vector<8x32xf32>
    %34 = arith.mulf %31, %33 : vector<8x32xf32>
    %c0_15 = arith.constant 0 : index
    %c0_16 = arith.constant 0 : index
    %35 = vector.load %arg6[%c0_15, %c0_16] : memref<1x32xf32, #tpu.memory_space<vmem>>, vector<1x32xf32>
    %36 = vector.broadcast %35 : vector<1x32xf32> to vector<8x32xf32>
    %37 = arith.addf %34, %36 : vector<8x32xf32>
    %c0_17 = arith.constant 0 : index
    %c0_18 = arith.constant 0 : index
    %38 = vector.load %arg2[%c0_17, %c0_18] : memref<8x32xf32, #tpu.memory_space<vmem>>, vector<8x32xf32>
    %c0_19 = arith.constant 0 : index
    %c0_20 = arith.constant 0 : index
    %39 = vector.load %arg3[%c0_19, %c0_20] : memref<32x32xf32, #tpu.memory_space<vmem>>, vector<32x32xf32>
    %cst_21 = arith.constant dense<0.000000e+00> : vector<8x32xf32>
    %40 = tpu.matmul %38, %39, %cst_21 {dimension_numbers = #tpu.dot_dimension_numbers<[1], [0], [0], [1], [0, 0, 1, 1], [], []>} : vector<8x32xf32>, vector<32x32xf32>, vector<8x32xf32> -> vector<8x32xf32>
    %c0_22 = arith.constant 0 : index
    %c0_23 = arith.constant 0 : index
    %41 = vector.load %arg4[%c0_22, %c0_23] : memref<1x32xf32, #tpu.memory_space<vmem>>, vector<1x32xf32>
    %42 = vector.broadcast %41 : vector<1x32xf32> to vector<8x32xf32>
    %43 = arith.addf %40, %42 : vector<8x32xf32>
    %cst_24 = arith.constant 5.000000e-01 : f32
    %44 = vector.broadcast %cst_24 : f32 to vector<8x32xf32>
    %45 = arith.mulf %44, %43 : vector<8x32xf32>
    %cst_25 = arith.constant 0.707106769 : f32
    %46 = vector.broadcast %cst_25 : f32 to vector<8x32xf32>
    %47 = arith.mulf %43, %46 : vector<8x32xf32>
    %48 = math.erf %47 : vector<8x32xf32>
    %cst_26 = arith.constant 1.000000e+00 : f32
    %49 = vector.broadcast %cst_26 : f32 to vector<8x32xf32>
    %50 = arith.addf %49, %48 : vector<8x32xf32>
    %51 = arith.mulf %45, %50 : vector<8x32xf32>
    %cst_27 = arith.constant dense<0.000000e+00> : vector<8xf32>
    %52 = vector.multi_reduction <add>, %51, %cst_27 [1] : vector<8x32xf32> to vector<8xf32>
    %53 = vector.shape_cast %52 : vector<8xf32> to vector<8x1xf32>
    %cst_28 = arith.constant 3.200000e+01 : f32
    %54 = vector.broadcast %cst_28 : f32 to vector<8x1xf32>
    %55 = arith.divf %53, %54 : vector<8x1xf32>
    %56 = arith.mulf %51, %51 : vector<8x32xf32>
    %cst_29 = arith.constant dense<0.000000e+00> : vector<8xf32>
    %57 = vector.multi_reduction <add>, %56, %cst_29 [1] : vector<8x32xf32> to vector<8xf32>
    %58 = vector.shape_cast %57 : vector<8xf32> to vector<8x1xf32>
    %cst_30 = arith.constant 3.200000e+01 : f32
    %59 = vector.broadcast %cst_30 : f32 to vector<8x1xf32>
    %60 = arith.divf %58, %59 : vector<8x1xf32>
    %61 = arith.mulf %55, %55 : vector<8x1xf32>
    %62 = arith.subf %60, %61 : vector<8x1xf32>
    %63 = vector.broadcast %55 : vector<8x1xf32> to vector<8x32xf32>
    %64 = arith.subf %51, %63 : vector<8x32xf32>
    %cst_31 = arith.constant 9.99999996E-13 : f32
    %65 = vector.broadcast %cst_31 : f32 to vector<8x1xf32>
    %66 = arith.addf %62, %65 : vector<8x1xf32>
    %67 = math.rsqrt %66 : vector<8x1xf32>
    %68 = vector.broadcast %67 : vector<8x1xf32> to vector<8x32xf32>
    %69 = arith.mulf %64, %68 : vector<8x32xf32>
    %c0_32 = arith.constant 0 : index
    %c0_33 = arith.constant 0 : index
    %70 = vector.load %arg5[%c0_32, %c0_33] : memref<1x32xf32, #tpu.memory_space<vmem>>, vector<1x32xf32>
    %71 = vector.broadcast %70 : vector<1x32xf32> to vector<8x32xf32>
    %72 = arith.mulf %69, %71 : vector<8x32xf32>
    %c0_34 = arith.constant 0 : index
    %c0_35 = arith.constant 0 : index
    %73 = vector.load %arg6[%c0_34, %c0_35] : memref<1x32xf32, #tpu.memory_space<vmem>>, vector<1x32xf32>
    %74 = vector.broadcast %73 : vector<1x32xf32> to vector<8x32xf32>
    %75 = arith.addf %72, %74 : vector<8x32xf32>
    %c0_36 = arith.constant 0 : index
    %c0_37 = arith.constant 0 : index
    %76 = vector.load %arg7[%c0_36, %c0_37] : memref<32x32xf32, #tpu.memory_space<vmem>>, vector<32x32xf32>
    %cst_38 = arith.constant dense<0.000000e+00> : vector<8x32xf32>
    %77 = tpu.matmul %37, %76, %cst_38 {dimension_numbers = #tpu.dot_dimension_numbers<[1], [0], [0], [1], [0, 0, 1, 1], [], []>} : vector<8x32xf32>, vector<32x32xf32>, vector<8x32xf32> -> vector<8x32xf32>
    %78 = arith.mulf %77, %75 : vector<8x32xf32>
    %cst_39 = arith.constant dense<0.000000e+00> : vector<8xf32>
    %79 = vector.multi_reduction <add>, %78, %cst_39 [1] : vector<8x32xf32> to vector<8xf32>
    %80 = vector.shape_cast %79 : vector<8xf32> to vector<8x1xf32>
    %c0_40 = arith.constant 0 : index
    %81 = memref.load %arg8[%c0_40] : memref<1xf32, #tpu.memory_space<smem>>
    %82 = vector.broadcast %81 : f32 to vector<8x1xf32>
    %83 = arith.addf %80, %82 : vector<8x1xf32>
    %c0_41 = arith.constant 0 : index
    %c0_42 = arith.constant 0 : index
    %84 = vector.load %arg9[%c0_41, %c0_42] : memref<8x1xf32, #tpu.memory_space<vmem>>, vector<8x1xf32>
    tpu.vector_store %arg9[%c0_41, %c0_42], %83 {strides = array<i32>} : memref<8x1xf32, #tpu.memory_space<vmem>>, vector<8x1xf32>,
    return
  }
  func.func @transform_0(%arg0: i32) -> (i32, i32) {
    %c0_i32 = arith.constant 0 : i32
    %c0_i32_0 = arith.constant 0 : i32
    return %arg0, %c0_i32 : i32, i32
  }
  func.func @transform_1(%arg0: i32) -> (i32, i32) {
    %c0_i32 = arith.constant 0 : i32
    %c0_i32_0 = arith.constant 0 : i32
    return %arg0, %c0_i32 : i32, i32
  }
  func.func @transform_2(%arg0: i32) -> (i32, i32) {
    %c0_i32 = arith.constant 0 : i32
    %c0_i32_0 = arith.constant 0 : i32
    %c0_i32_1 = arith.constant 0 : i32
    return %c0_i32, %c0_i32_0 : i32, i32
  }
  func.func @transform_3(%arg0: i32) -> (i32, i32) {
    %c0_i32 = arith.constant 0 : i32
    %c0_i32_0 = arith.constant 0 : i32
    %c0_i32_1 = arith.constant 0 : i32
    return %c0_i32, %c0_i32_0 : i32, i32
  }
  func.func @transform_4(%arg0: i32) -> (i32, i32) {
    %c0_i32 = arith.constant 0 : i32
    %c0_i32_0 = arith.constant 0 : i32
    %c0_i32_1 = arith.constant 0 : i32
    return %c0_i32, %c0_i32_0 : i32, i32
  }
  func.func @transform_5(%arg0: i32) -> (i32, i32) {
    %c0_i32 = arith.constant 0 : i32
    %c0_i32_0 = arith.constant 0 : i32
    %c0_i32_1 = arith.constant 0 : i32
    return %c0_i32, %c0_i32_0 : i32, i32
  }
  func.func @transform_6(%arg0: i32) -> (i32, i32) {
    %c0_i32 = arith.constant 0 : i32
    %c0_i32_0 = arith.constant 0 : i32
    %c0_i32_1 = arith.constant 0 : i32
    return %c0_i32, %c0_i32_0 : i32, i32
  }
  func.func @transform_7(%arg0: i32) -> i32 {
    %c0_i32 = arith.constant 0 : i32
    %c0_i32_0 = arith.constant 0 : i32
    return %c0_i32 : i32
  }
  func.func @transform_8(%arg0: i32) -> (i32, i32) {
    %c0_i32 = arith.constant 0 : i32
    %c0_i32_0 = arith.constant 0 : i32
    return %arg0, %c0_i32 : i32, i32
  }
}

</mosaic_0001>

<llo_original>
// kernel: tpu_custom_call.1
$region0: #{tpu_custom_call.1}
  #allocation0 [shape = 'u32[]', space=smem, size = 0x4, offset = 0x4, fixed_abs, tag = 'smem constant byte address 0x4 - core index']
  #allocation1 [shape = 'u32[144,128]{1,0:T(1,128)}', space=vmem, size = 0x12000, scoped, tag = 'internal scratch']
  #allocation2 [shape = 'f32[1]{0:T(128)S(6)}', space=smem, size = 0x200, scoped, tag = 'scoped memory for tpu_custom_call.1']
  %s0 = inlined_call_operand.hbm [shape: f32[8,32], index: 0, kind: input, shape index: {}]
  %s1 = inlined_call_operand.hbm [shape: f32[8,32], index: 1, kind: input, shape index: {}]
  %s2 = inlined_call_operand.hbm [shape: f32[32,32], index: 2, kind: input, shape index: {}]
  %s3 = inlined_call_operand.vmem [shape: f32[1,32], index: 3, kind: input, shape index: {}]
  %s4 = inlined_call_operand.vmem [shape: f32[1,32], index: 4, kind: input, shape index: {}]
  %s5 = inlined_call_operand.vmem [shape: f32[1,32], index: 5, kind: input, shape index: {}]
  %s6 = inlined_call_operand.hbm [shape: f32[32,32], index: 6, kind: input, shape index: {}]
  %s7 = inlined_call_operand.<no memory space> [shape: f32[1], index: 7, kind: input, shape index: {}]
  %s8 = inlined_call_operand.vmem [shape: f32[8,1], index: 8, kind: output, shape index: {}]
  %s9 = sld [smem:[#allocation0]]
  $region58: #{tpu_custom_call.1} parent=0
    _
  %s11 = ssub.s32 1, %s9
  %s12 = scalar_select 0, %s11, %s9
  %13 = sst [smem:[#allocation2]] %s7
  $region1: #{tpu_custom_call.1} parent=0
    #allocation3 [shape = 'u8[4096]{0}', space=vmem, size = 0x1000, scoped, tag = 'input window, operand 0, single buffered']
    #allocation4 [shape = 's32[1]{0}', space=sflag, size = 0x4, scoped, tag = 'scoped memory for tpu_custom_call.1']
    #allocation5 [shape = 'u8[4096]{0}', space=vmem, size = 0x1000, scoped, tag = 'input window, operand 1, single buffered']
    #allocation6 [shape = 's32[1]{0}', space=sflag, size = 0x4, scoped, tag = 'scoped memory for tpu_custom_call.1']
    #allocation7 [shape = 'u8[16384]{0}', space=vmem, size = 0x4000, scoped, tag = 'input window, operand 2, single buffered']
    #allocation8 [shape = 'u8[16384]{0}', space=vmem, size = 0x4000, scoped, tag = 'input window, operand 6, single buffered']
    #allocation9 [shape = 's32[1]{0}', space=sflag, size = 0x4, scoped, tag = 'scoped memory for tpu_custom_call.1']
    %14 = vsyncpa [#allocation4], 0
    %15 = vsyncpa [#allocation6], 0
    %16 = vsyncpa [#allocation9], 0
    // Predicated region
    $region2: #{tpu_custom_call.1} parent=1 // pred_check
      _
    $region3: #{tpu_custom_call.1} parent=1 // pred_check_branch
      %18 = sbr.rel (0) target = $region5
    $region4: #{tpu_custom_call.1} parent=1 // pred_region
      %s20 = ssub.s32 128, 128
      %21 = vsyncadd [#allocation4], %s20
      %s23 = sshll.u32 [#allocation3], 4
      %s24 = int_to_ptr.vmem [resolvable:$true] %s23
      %26 = dma.hbm_to_vmem [thread:$0]  %s0, 128, %s24, [#allocation4]
    $region5: #{tpu_custom_call.1} parent=1 // pred_fallthru
      _
    // Predicated region
    $region6: #{tpu_custom_call.1} parent=1 // pred_check
      _
    $region7: #{tpu_custom_call.1} parent=1 // pred_check_branch
      %28 = sbr.rel (0) target = $region9
    $region8: #{tpu_custom_call.1} parent=1 // pred_region
      %s30 = ssub.s32 128, 128
      %31 = vsyncadd [#allocation6], %s30
      %s33 = sshll.u32 [#allocation5], 4
      %s34 = int_to_ptr.vmem [resolvable:$true] %s33
      %36 = dma.hbm_to_vmem [thread:$0]  %s1, 128, %s34, [#allocation6]
    $region9: #{tpu_custom_call.1} parent=1 // pred_fallthru
      _
    // Predicated region
    $region10: #{tpu_custom_call.1} parent=1 // pred_check
      _
    $region11: #{tpu_custom_call.1} parent=1 // pred_check_branch
      %38 = sbr.rel (0) target = $region13
    $region12: #{tpu_custom_call.1} parent=1 // pred_region
      %s40 = ssub.s32 512, 512
      %41 = vsyncadd [#allocation6], %s40
      %s42 = sshll.u32 [#allocation7], 4
      %s43 = int_to_ptr.vmem [resolvable:$true] %s42
      %48 = dma.hbm_to_vmem [thread:$0]  %s2, 512, %s43, [#allocation6], 128, 128, 8
    $region13: #{tpu_custom_call.1} parent=1 // pred_fallthru
      _
    // Predicated region
    $region14: #{tpu_custom_call.1} parent=1 // pred_check
      _
    $region15: #{tpu_custom_call.1} parent=1 // pred_check_branch
      %50 = sbr.rel (0) target = $region17
    $region16: #{tpu_custom_call.1} parent=1 // pred_region
      _
    $region17: #{tpu_custom_call.1} parent=1 // pred_fallthru
      _
    // Predicated region
    $region18: #{tpu_custom_call.1} parent=1 // pred_check
      _
    $region19: #{tpu_custom_call.1} parent=1 // pred_check_branch
      %52 = sbr.rel (0) target = $region21
    $region20: #{tpu_custom_call.1} parent=1 // pred_region
      _
    $region21: #{tpu_custom_call.1} parent=1 // pred_fallthru
      _
    // Predicated region
    $region22: #{tpu_custom_call.1} parent=1 // pred_check
      _
    $region23: #{tpu_custom_call.1} parent=1 // pred_check_branch
      %54 = sbr.rel (0) target = $region25
    $region24: #{tpu_custom_call.1} parent=1 // pred_region
      _
    $region25: #{tpu_custom_call.1} parent=1 // pred_fallthru
      _
    // Predicated region
    $region26: #{tpu_custom_call.1} parent=1 // pred_check
      _
    $region27: #{tpu_custom_call.1} parent=1 // pred_check_branch
      %56 = sbr.rel (0) target = $region29
    $region28: #{tpu_custom_call.1} parent=1 // pred_region
      %s58 = ssub.s32 512, 512
      %59 = vsyncadd [#allocation9], %s58
      %s60 = sshll.u32 [#allocation8], 4
      %s61 = int_to_ptr.vmem [resolvable:$true] %s60
      %66 = dma.hbm_to_vmem [thread:$0]  %s6, 512, %s61, [#allocation9], 128, 128, 8
    $region29: #{tpu_custom_call.1} parent=1 // pred_fallthru
      _
    // Predicated region
    $region30: #{tpu_custom_call.1} parent=1 // pred_check
      _
    $region31: #{tpu_custom_call.1} parent=1 // pred_check_branch
      %68 = sbr.rel (0) target = $region33
    $region32: #{tpu_custom_call.1} parent=1 // pred_region
      _
    $region33: #{tpu_custom_call.1} parent=1 // pred_fallthru
      _
    // Predicated region
    $region34: #{tpu_custom_call.1} parent=1 // pred_check
      _
    $region35: #{tpu_custom_call.1} parent=1 // pred_check_branch
      %70 = sbr.rel (0) target = $region37
    $region36: #{tpu_custom_call.1} parent=1 // pred_region
      %71 = dma.done [#allocation4], 128
    $region37: #{tpu_custom_call.1} parent=1 // pred_fallthru
      _
    // Predicated region
    $region38: #{tpu_custom_call.1} parent=1 // pred_check
      _
    $region39: #{tpu_custom_call.1} parent=1 // pred_check_branch
      %73 = sbr.rel (0) target = $region41
    $region40: #{tpu_custom_call.1} parent=1 // pred_region
      %74 = dma.done [#allocation6], 128
    $region41: #{tpu_custom_call.1} parent=1 // pred_fallthru
      _
    // Predicated region
    $region42: #{tpu_custom_call.1} parent=1 // pred_check
      _
    $region43: #{tpu_custom_call.1} parent=1 // pred_check_branch
      %76 = sbr.rel (0) target = $region45
    $region44: #{tpu_custom_call.1} parent=1 // pred_region
      %77 = dma.done [#allocation6], 512
    $region45: #{tpu_custom_call.1} parent=1 // pred_fallthru
      _
    // Predicated region
    $region46: #{tpu_custom_call.1} parent=1 // pred_check
      _
    $region47: #{tpu_custom_call.1} parent=1 // pred_check_branch
      %79 = sbr.rel (0) target = $region49
    $region48: #{tpu_custom_call.1} parent=1 // pred_region
      %80 = dma.done [#allocation9], 512
    $region49: #{tpu_custom_call.1} parent=1 // pred_fallthru
      _
    %v81 = vld [vmem:[#allocation3] sm:$0xff]
    %v82 = vld [vmem:[#allocation7] sm:$0xff]
    %v83 = vld [vmem:[#allocation7 + $0x8] sm:$0xff]
    %v84 = vld [vmem:[#allocation7 + $0x10] sm:$0xff]
    %v85 = vld [vmem:[#allocation7 + $0x18] sm:$0xff]
    %v86 = vld [vmem:[%s3] sm:$0x1]
    %v88 = vlaneseq
    %v89 = vshrl.u32 %v88, 7
    %v90 = vsub.s32 0, %v89
    %v91 = vrot.slane %v86, %v90
    %vm93 = vcmask 261120
    %v95 = vsel %vm93, %v81, 0
    %97 = vmatprep.subr.mxu0 0.0
    %98 = vmatpush1.msra.mxu0 0.0
    %99 = vmatprep.subr.mxu0 0.0
    %100 = vmatpush1.msra.mxu0 0.0
    %101 = vmatprep.subr.mxu0 0.0
    %102 = vmatpush1.msra.mxu0 0.0
    %103 = vmatprep.subr.mxu0 0.0
    %104 = vmatpush1.msra.mxu0 0.0
    %105 = vmatprep.subr.mxu0 0.0
    %106 = vmatpush1.msra.mxu0 0.0
    %107 = vmatprep.subr.mxu0 0.0
    %108 = vmatpush1.msra.mxu0 0.0
    %109 = vmatprep.subr.mxu0 0.0
    %110 = vmatpush1.msra.mxu0 0.0
    %111 = vmatprep.subr.mxu0 0.0
    %112 = vmatpush1.msra.mxu0 0.0
    %113 = vmatprep.subr.mxu0 0.0
    %114 = vmatpush1.msra.mxu0 0.0
    %115 = vmatprep.subr.mxu0 0.0
    %116 = vmatpush1.msra.mxu0 0.0
    %117 = vmatprep.subr.mxu0 0.0
    %118 = vmatpush1.msra.mxu0 0.0
    %119 = vmatprep.subr.mxu0 0.0
    %120 = vmatpush1.msra.mxu0 0.0
    %121 = vmatprep.subr.mxu0 0.0
    %122 = vmatpush1.msra.mxu0 %v85
    %123 = vmatprep.subr.mxu0 0.0
    %124 = vmatpush1.msra.mxu0 %v84
    %125 = vmatprep.subr.mxu0 0.0
    %126 = vmatpush1.msra.mxu0 %v83
    %127 = vmatprep.subr.mxu0 0.0
    %128 = vmatpush1.msra.mxu0 %v82
    %129 = vmatprep.subr.mxu0 0.0
    %130 = vmatpush2.msra.mxu0 0.0
    %131 = vmatprep.subr.mxu0 0.0
    %132 = vmatpush2.msra.mxu0 0.0
    %133 = vmatprep.subr.mxu0 0.0
    %134 = vmatpush2.msra.mxu0 0.0
    %135 = vmatprep.subr.mxu0 0.0
    %136 = vmatpush2.msra.mxu0 0.0
    %137 = vmatprep.subr.mxu0 0.0
    %138 = vmatpush2.msra.mxu0 0.0
    %139 = vmatprep.subr.mxu0 0.0
    %140 = vmatpush2.msra.mxu0 0.0
    %141 = vmatprep.subr.mxu0 0.0
    %142 = vmatpush2.msra.mxu0 0.0
    %143 = vmatprep.subr.mxu0 0.0
    %144 = vmatpush2.msra.mxu0 0.0
    %145 = vmatprep.subr.mxu0 0.0
    %146 = vmatpush2.msra.mxu0 0.0
    %147 = vmatprep.subr.mxu0 0.0
    %148 = vmatpush2.msra.mxu0 0.0
    %149 = vmatprep.subr.mxu0 0.0
    %150 = vmatpush2.msra.mxu0 0.0
    %151 = vmatprep.subr.mxu0 0.0
    %152 = vmatpush2.msra.mxu0 0.0
    %153 = vmatprep.subr.mxu0 0.0
    %154 = vmatpush2.msra.mxu0 0.0
    %155 = vmatprep.subr.mxu0 0.0
    %156 = vmatpush2.msra.mxu0 0.0
    %157 = vmatprep.subr.mxu0 0.0
    %158 = vmatpush2.msra.mxu0 0.0
    %159 = vmatprep.subr.mxu0 0.0
    %160 = vmatpush2.msra.mxu0 0.0
    %161 = vmatprep.mubr.f32.mxu0 0.0
    %162 = vmatmul.mubr.f32.gmra.mxu0 %v95
    %v163 = vpop.f32.mrf.mxu0
    %v164 = vadd.f32 %v91, %v163
    %v165 = vpop.f32.mrf.mxu0
    %166 = vdwg.mxu0
    %v167 = vmul.f32 %v164, 0.5
    %v168 = vmul.f32 %v164, 0.70710677
    %v169 = verf.f32.pop %v168
    %v170 = vadd.f32 %v169, 1.0
    %v171 = vmul.f32 %v167, %v170
    %v172 = vsel %vm93, %v171, 0.0
    %173 = vadd.xlane.f32.xlu0 %v172
    %v174 = vpop.xlane.xlu0 %173
    %v175 = vrcp.pop 32.0
    %v176 = vmul.f32 %v174, %v175
    %v177 = vmul.f32 %v171, %v171
    %v178 = vsel %vm93, %v177, 0.0
    %179 = vadd.xlane.f32.xlu0 %v178
    %v180 = vpop.xlane.xlu0 %179
    %v181 = vmul.f32 %v180, %v175
    %v182 = vmul.f32 %v176, %v176
    %v183 = vsub.f32 %v181, %v182
    %v184 = vsub.f32 %v171, %v176
    %v185 = vadd.f32 %v183, 1e-12
    %v186 = vrsqrt.pop %v185
    %v187 = vmul.f32 %v184, %v186
    %v188 = vld [vmem:[%s4] sm:$0x1]
    %v190 = vlaneseq
    %v191 = vshrl.u32 %v190, 7
    %v192 = vsub.s32 0, %v191
    %v193 = vrot.slane %v188, %v192
    %v195 = vmul.f32 %v187, %v193
    %v196 = vld [vmem:[%s5] sm:$0x1]
    %v198 = vlaneseq
    %v199 = vshrl.u32 %v198, 7
    %v200 = vsub.s32 0, %v199
    %v201 = vrot.slane %v196, %v200
    %v203 = vadd.f32 %v195, %v201
    %v204 = vld [vmem:[#allocation5] sm:$0xff]
    %v206 = vsel %vm93, %v204, 0
    %208 = vmatprep.subr.mxu0 0.0
    %209 = vmatpush1.msra.mxu0 0.0
    %210 = vmatprep.subr.mxu0 0.0
    %211 = vmatpush1.msra.mxu0 0.0
    %212 = vmatprep.subr.mxu0 0.0
    %213 = vmatpush1.msra.mxu0 0.0
    %214 = vmatprep.subr.mxu0 0.0
    %215 = vmatpush1.msra.mxu0 0.0
    %216 = vmatprep.subr.mxu0 0.0
    %217 = vmatpush1.msra.mxu0 0.0
    %218 = vmatprep.subr.mxu0 0.0
    %219 = vmatpush1.msra.mxu0 0.0
    %220 = vmatprep.subr.mxu0 0.0
    %221 = vmatpush1.msra.mxu0 0.0
    %222 = vmatprep.subr.mxu0 0.0
    %223 = vmatpush1.msra.mxu0 0.0
    %224 = vmatprep.subr.mxu0 0.0
    %225 = vmatpush1.msra.mxu0 0.0
    %226 = vmatprep.subr.mxu0 0.0
    %227 = vmatpush1.msra.mxu0 0.0
    %228 = vmatprep.subr.mxu0 0.0
    %229 = vmatpush1.msra.mxu0 0.0
    %230 = vmatprep.subr.mxu0 0.0
    %231 = vmatpush1.msra.mxu0 0.0
    %232 = vmatprep.subr.mxu0 0.0
    %233 = vmatpush1.msra.mxu0 %v85
    %234 = vmatprep.subr.mxu0 0.0
    %235 = vmatpush1.msra.mxu0 %v84
    %236 = vmatprep.subr.mxu0 0.0
    %237 = vmatpush1.msra.mxu0 %v83
    %238 = vmatprep.subr.mxu0 0.0
    %239 = vmatpush1.msra.mxu0 %v82
    %240 = vmatprep.subr.mxu0 0.0
    %241 = vmatpush2.msra.mxu0 0.0
    %242 = vmatprep.subr.mxu0 0.0
    %243 = vmatpush2.msra.mxu0 0.0
    %244 = vmatprep.subr.mxu0 0.0
    %245 = vmatpush2.msra.mxu0 0.0
    %246 = vmatprep.subr.mxu0 0.0
    %247 = vmatpush2.msra.mxu0 0.0
    %248 = vmatprep.subr.mxu0 0.0
    %249 = vmatpush2.msra.mxu0 0.0
    %250 = vmatprep.subr.mxu0 0.0
    %251 = vmatpush2.msra.mxu0 0.0
    %252 = vmatprep.subr.mxu0 0.0
    %253 = vmatpush2.msra.mxu0 0.0
    %254 = vmatprep.subr.mxu0 0.0
    %255 = vmatpush2.msra.mxu0 0.0
    %256 = vmatprep.subr.mxu0 0.0
    %257 = vmatpush2.msra.mxu0 0.0
    %258 = vmatprep.subr.mxu0 0.0
    %259 = vmatpush2.msra.mxu0 0.0
    %260 = vmatprep.subr.mxu0 0.0
    %261 = vmatpush2.msra.mxu0 0.0
    %262 = vmatprep.subr.mxu0 0.0
    %263 = vmatpush2.msra.mxu0 0.0
    %264 = vmatprep.subr.mxu0 0.0
    %265 = vmatpush2.msra.mxu0 0.0
    %266 = vmatprep.subr.mxu0 0.0
    %267 = vmatpush2.msra.mxu0 0.0
    %268 = vmatprep.subr.mxu0 0.0
    %269 = vmatpush2.msra.mxu0 0.0
    %270 = vmatprep.subr.mxu0 0.0
    %271 = vmatpush2.msra.mxu0 0.0
    %272 = vmatprep.mubr.f32.mxu0 0.0
    %273 = vmatmul.mubr.f32.gmra.mxu0 %v206
    %v274 = vpop.f32.mrf.mxu0
    %v275 = vadd.f32 %v91, %v274
    %v276 = vpop.f32.mrf.mxu0
    %277 = vdwg.mxu0
    %v278 = vmul.f32 %v275, 0.5
    %v279 = vmul.f32 %v275, 0.70710677
    %v280 = verf.f32.pop %v279
    %v281 = vadd.f32 %v280, 1.0
    %v282 = vmul.f32 %v278, %v281
    %v283 = vsel %vm93, %v282, 0.0
    %284 = vadd.xlane.f32.xlu0 %v283
    %v285 = vpop.xlane.xlu0 %284
    %v286 = vmul.f32 %v285, %v175
    %v287 = vmul.f32 %v282, %v282
    %v288 = vsel %vm93, %v287, 0.0
    %289 = vadd.xlane.f32.xlu0 %v288
    %v290 = vpop.xlane.xlu0 %289
    %v291 = vmul.f32 %v290, %v175
    %v292 = vmul.f32 %v286, %v286
    %v293 = vsub.f32 %v291, %v292
    %v294 = vsub.f32 %v282, %v286
    %v295 = vadd.f32 %v293, 1e-12
    %v296 = vrsqrt.pop %v295
    %v297 = vmul.f32 %v294, %v296
    %v298 = vmul.f32 %v297, %v193
    %v299 = vadd.f32 %v298, %v201
    %v300 = vld [vmem:[#allocation8] sm:$0xff]
    %v301 = vld [vmem:[#allocation8 + $0x8] sm:$0xff]
    %v302 = vld [vmem:[#allocation8 + $0x10] sm:$0xff]
    %v303 = vld [vmem:[#allocation8 + $0x18] sm:$0xff]
    %v305 = vsel %vm93, %v203, 0
    %307 = vmatprep.subr.mxu0 0.0
    %308 = vmatpush1.msra.mxu0 0.0
    %309 = vmatprep.subr.mxu0 0.0
    %310 = vmatpush1.msra.mxu0 0.0
    %311 = vmatprep.subr.mxu0 0.0
    %312 = vmatpush1.msra.mxu0 0.0
    %313 = vmatprep.subr.mxu0 0.0
    %314 = vmatpush1.msra.mxu0 0.0
    %315 = vmatprep.subr.mxu0 0.0
    %316 = vmatpush1.msra.mxu0 0.0
    %317 = vmatprep.subr.mxu0 0.0
    %318 = vmatpush1.msra.mxu0 0.0
    %319 = vmatprep.subr.mxu0 0.0
    %320 = vmatpush1.msra.mxu0 0.0
    %321 = vmatprep.subr.mxu0 0.0
    %322 = vmatpush1.msra.mxu0 0.0
    %323 = vmatprep.subr.mxu0 0.0
    %324 = vmatpush1.msra.mxu0 0.0
    %325 = vmatprep.subr.mxu0 0.0
    %326 = vmatpush1.msra.mxu0 0.0
    %327 = vmatprep.subr.mxu0 0.0
    %328 = vmatpush1.msra.mxu0 0.0
    %329 = vmatprep.subr.mxu0 0.0
    %330 = vmatpush1.msra.mxu0 0.0
    %331 = vmatprep.subr.mxu0 0.0
    %332 = vmatpush1.msra.mxu0 %v303
    %333 = vmatprep.subr.mxu0 0.0
    %334 = vmatpush1.msra.mxu0 %v302
    %335 = vmatprep.subr.mxu0 0.0
    %336 = vmatpush1.msra.mxu0 %v301
    %337 = vmatprep.subr.mxu0 0.0
    %338 = vmatpush1.msra.mxu0 %v300
    %339 = vmatprep.subr.mxu0 0.0
    %340 = vmatpush2.msra.mxu0 0.0
    %341 = vmatprep.subr.mxu0 0.0
    %342 = vmatpush2.msra.mxu0 0.0
    %343 = vmatprep.subr.mxu0 0.0
    %344 = vmatpush2.msra.mxu0 0.0
    %345 = vmatprep.subr.mxu0 0.0
    %346 = vmatpush2.msra.mxu0 0.0
    %347 = vmatprep.subr.mxu0 0.0
    %348 = vmatpush2.msra.mxu0 0.0
    %349 = vmatprep.subr.mxu0 0.0
    %350 = vmatpush2.msra.mxu0 0.0
    %351 = vmatprep.subr.mxu0 0.0
    %352 = vmatpush2.msra.mxu0 0.0
    %353 = vmatprep.subr.mxu0 0.0
    %354 = vmatpush2.msra.mxu0 0.0
    %355 = vmatprep.subr.mxu0 0.0
    %356 = vmatpush2.msra.mxu0 0.0
    %357 = vmatprep.subr.mxu0 0.0
    %358 = vmatpush2.msra.mxu0 0.0
    %359 = vmatprep.subr.mxu0 0.0
    %360 = vmatpush2.msra.mxu0 0.0
    %361 = vmatprep.subr.mxu0 0.0
    %362 = vmatpush2.msra.mxu0 0.0
    %363 = vmatprep.subr.mxu0 0.0
    %364 = vmatpush2.msra.mxu0 0.0
    %365 = vmatprep.subr.mxu0 0.0
    %366 = vmatpush2.msra.mxu0 0.0
    %367 = vmatprep.subr.mxu0 0.0
    %368 = vmatpush2.msra.mxu0 0.0
    %369 = vmatprep.subr.mxu0 0.0
    %370 = vmatpush2.msra.mxu0 0.0
    %371 = vmatprep.mubr.f32.mxu0 0.0
    %372 = vmatmul.mubr.f32.gmra.mxu0 %v305
    %v373 = vpop.f32.mrf.mxu0
    %v374 = vadd.f32 0.0, %v373
    %v375 = vpop.f32.mrf.mxu0
    %376 = vdwg.mxu0
    %v377 = vmul.f32 %v374, %v299
    %v378 = vsel %vm93, %v377, 0.0
    %379 = vadd.xlane.f32.xlu0 %v378
    %v380 = vpop.xlane.xlu0 %379
    %s381 = sld [smem:[#allocation2]]
    %v382 = vstv %s381
    %v383 = vadd.f32 %v380, %v382
    %vm384 = vcmask 7168
    %385 = vst.msk [vmem:[%s8] sm:$0xff] %vm384, %v383
    // Predicated region
    $region50: #{tpu_custom_call.1} parent=1 // pred_check
      _
    $region51: #{tpu_custom_call.1} parent=1 // pred_check_branch
      %387 = sbr.rel (0) target = $region53
    $region52: #{tpu_custom_call.1} parent=1 // pred_region
      _
    $region53: #{tpu_custom_call.1} parent=1 // pred_fallthru
      _
    // Predicated region
    $region54: #{tpu_custom_call.1} parent=1 // pred_check
      _
    $region55: #{tpu_custom_call.1} parent=1 // pred_check_branch
      %389 = sbr.rel (0) target = $region57
    $region56: #{tpu_custom_call.1} parent=1 // pred_region
      _
    $region57: #{tpu_custom_call.1} parent=1 // pred_fallthru
      _
    %390 = vsyncpa [#allocation4], 1
    %391 = vsyncpa [#allocation6], 1
    %392 = vsyncpa [#allocation9], 1

</llo_original>
